<compile_context>
chip_gen: v7x
topology: tpu7x:2x2x1
jax: 0.10.0
libtpu: 0.0.40
codegen_flags: <defaults>
</compile_context>

<pallas_src>
import jax
import jax.numpy as jnp
from jax.experimental import pallas as pl
from jax.experimental.pallas import tpu as pltpu

EPS = 1e-5          # nn.BatchNorm1d default
LANE = 128          # TPU lane width
SUBLANE = 8         # f32 sublane count
BATCH_UNIT = 16     # batch-tile rounding unit (valid for f32 (8,128) and bf16 (16,128))


def _round_up(n, m):
    return ((n + m - 1) // m) * m


def _divisor_tiles(total, unit):
    """Divisors of `total` that are multiples of `unit`, descending."""
    n = total // unit
    return [unit * d for d in range(n, 0, -1) if n % d == 0]


# ---------------------------------------------------------------------------
# Pass 1: fc1 (K-streamed) + partial BatchNorm statistics (per batch tile)
# ---------------------------------------------------------------------------
def _fc1_stats_kernel(x_ref, w1_ref, h_ref, stats_ref, acc_ref):
    k = pl.program_id(1)

    @pl.when(k == 0)
    def _init():
        acc_ref[...] = jnp.zeros_like(acc_ref)

    # (TB, TK) @ (TK, Hp) -> f32 accumulator
    acc_ref[...] += jnp.dot(x_ref[...], w1_ref[...],
                            preferred_element_type=jnp.float32)

    @pl.when(k == pl.num_programs(1) - 1)
    def _finalize():
        h = acc_ref[...]                               # (TB, Hp) f32
        h_ref[...] = h.astype(h_ref.dtype)             # compute-dtype stash (bf16 default)
        hp = h.shape[1]
        ssum = jnp.sum(h, axis=0, keepdims=True)       # (1, Hp)  from f32 acc
        ssq = jnp.sum(h * h, axis=0, keepdims=True)    # (1, Hp)
        # lane-packed (1, 1, 2*Hp) stats block: [ sum | sum_sq ]
        stats_ref[0, :, :hp] = ssum
        stats_ref[0, :, hp:] = ssq


# ---------------------------------------------------------------------------
# Pass 2: folded BN affine (one FMA) + ReLU + fc2 (hidden-axis streamed)
# ---------------------------------------------------------------------------
def _bn_relu_fc2_kernel(h_ref, scale_ref, shift_ref, w2_ref, b2_ref, o_ref,
                        acc_ref):
    k = pl.program_id(1)

    @pl.when(k == 0)
    def _init():
        acc_ref[...] = jnp.zeros_like(acc_ref)

    h = h_ref[...].astype(jnp.float32)                  # (TB, TH)
    h_bn = h * scale_ref[...] + shift_ref[...]          # folded BN: one FMA
    h_act = jnp.maximum(h_bn, 0.0).astype(w2_ref.dtype)  # ReLU, cast for MXU
    acc_ref[...] += jnp.dot(h_act, w2_ref[...],
                            preferred_element_type=jnp.float32)

    @pl.when(k == pl.num_programs(1) - 1)
    def _finalize():
        o_ref[...] = (acc_ref[...] + b2_ref[...]).astype(o_ref.dtype)


# ---------------------------------------------------------------------------
# Parameter packing: PyTorch layout -> padded, transposed, kernel-ready
# ---------------------------------------------------------------------------
def pack_params(pt_params, compute_dtype=jnp.bfloat16):
    w1 = pt_params["w1"]          # (H, D)  torch Linear layout (out, in)
    w2 = pt_params["w2"]          # (D, H)
    H, D = w1.shape
    Dp, Hp = _round_up(D, LANE), _round_up(H, LANE)
    w1_p = jnp.zeros((Dp, Hp), compute_dtype).at[:D, :H].set(
        w1.T.astype(compute_dtype))
    w2_p = jnp.zeros((Hp, Dp), compute_dtype).at[:H, :D].set(
        w2.T.astype(compute_dtype))
    gamma_p = jnp.zeros((1, Hp), jnp.float32).at[0, :H].set(pt_params["gamma"])
    beta_p = jnp.zeros((1, Hp), jnp.float32).at[0, :H].set(pt_params["beta"])
    b2_p = jnp.zeros((1, Dp), jnp.float32).at[0, :D].set(pt_params["b2"])
    # NOTE: fc1's bias b1 is dropped on purpose — it is cancelled exactly by
    # the training-mode BatchNorm mean subtraction (NOT valid for eval-mode BN
    # with running stats).
    return {"w1": w1_p, "w2": w2_p, "gamma": gamma_p, "beta": beta_p,
            "b2": b2_p, "D": D, "H": H, "Dp": Dp, "Hp": Hp}


# ---------------------------------------------------------------------------
# VMEM config + tile selection
# ---------------------------------------------------------------------------
def _vmem_config():
    cap = 64 * 1024 * 1024                 # conservative fallback (v7x per-TC)
    try:
        cap = int(pltpu.get_tpu_info().vmem_capacity_bytes) or cap
    except Exception:
        pass
    limit = (cap * 3) // 4                 # ~48 MiB on v7x, ~96 MiB on v5e/v6e
    budget = max(limit - 4 * 1024 * 1024, 8 * 1024 * 1024)   # compiler headroom
    return limit, budget


def _choose_tiling(B, Dp, Hp, w_item, stash_item, out_item, tb_max, budget):
    """Pick (TB, TK, TH).  Counts 2 buffers for EVERY input/output BlockSpec
    (Pallas double-buffers even constant-index blocks) and prefers streaming
    the weight contraction axes over shrinking the batch tile."""
    TB = max(min(_round_up(tb_max, BATCH_UNIT), _round_up(B, BATCH_UNIT)),
             BATCH_UNIT)

    def need1(tb, tk):   # pass 1
        return (2 * tb * tk * w_item            # x (double-buffered)
                + 2 * tk * Hp * w_item          # W1
                + 2 * tb * Hp * stash_item      # h stash
                + 2 * 2 * Hp * 4                # stats
                + tb * Hp * 4)                  # f32 accumulator

    def need2(tb, th):   # pass 2
        return (2 * tb * th * stash_item        # h
                + 2 * th * Dp * w_item          # W2
                + 2 * 2 * th * 4                # scale + shift
                + 2 * Dp * 4                    # b2
                + 2 * tb * Dp * out_item        # out
                + tb * Dp * 4)                  # f32 accumulator

    tk_opts = _divisor_tiles(Dp, LANE)
    th_opts = _divisor_tiles(Hp, LANE)
    while True:
        tk = next((t for t in tk_opts if need1(TB, t) <= budget), None)
        th = next((t for t in th_opts if need2(TB, t) <= budget), None)
        if tk is not None and th is not None:
            return TB, tk, th
        if TB <= BATCH_UNIT:                    # give up on budget: smallest tiles
            return TB, tk or LANE, th or LANE
        TB = max(_round_up(TB // 2, BATCH_UNIT), BATCH_UNIT)


# ---------------------------------------------------------------------------
# Forward
# ---------------------------------------------------------------------------
def predictor_forward(x, p, *, batch_tile=512, out_dtype=jnp.float32,
                      stash_dtype=None):
    B, D = x.shape
    assert D == p["D"], "latent_dim mismatch between x and packed params"
    Dp, Hp = p["Dp"], p["Hp"]
    compute_dtype = p["w1"].dtype
    stash_dtype = compute_dtype if stash_dtype is None else stash_dtype
    w_item = jnp.dtype(compute_dtype).itemsize
    stash_item = jnp.dtype(stash_dtype).itemsize
    out_item = jnp.dtype(out_dtype).itemsize

    vmem_limit, vmem_budget = _vmem_config()
    TB, TK, TH = _choose_tiling(B, Dp, Hp, w_item, stash_item, out_item,
                                batch_tile, vmem_budget)
    # v7x has 2 TensorCores: make the "parallel" batch axis >= 2 tiles if possible.
    if _round_up(B, TB) // TB < 2:
        tb_half = max(_round_up(-(-B // 2), BATCH_UNIT), BATCH_UNIT)
        if tb_half < TB:
            TB = tb_half
    Bp = _round_up(B, TB)
    nt, nk, nh = Bp // TB, Dp // TK, Hp // TH

    # Pad batch and feature dims; padded rows/cols are exact zeros.
    x_p = jnp.zeros((Bp, Dp), compute_dtype).at[:B, :D].set(
        x.astype(compute_dtype))

    cparams = pltpu.CompilerParams(
        dimension_semantics=("parallel", "arbitrary"),   # batch over TCs, K serial
        vmem_limit_bytes=vmem_limit)

    # ---- pass 1: fc1 + per-tile partial BN stats ---------------------------
    flops1 = 2 * Bp * Dp * Hp
    bytes1 = (Bp * Dp * w_item + Dp * Hp * w_item * (nt if nk > 1 else 1)
              + Bp * Hp * stash_item + nt * 2 * Hp * 4)
    h_stash, stats = pl.pallas_call(
        _fc1_stats_kernel,
        out_shape=(jax.ShapeDtypeStruct((Bp, Hp), stash_dtype),
                   jax.ShapeDtypeStruct((nt, 1, 2 * Hp), jnp.float32)),
        grid=(nt, nk),
        in_specs=[pl.BlockSpec((TB, TK), lambda i, k: (i, k)),    # x: streams
                  pl.BlockSpec((TK, Hp), lambda i, k: (k, 0))],   # W1 (resident if nk==1)
        out_specs=(pl.BlockSpec((TB, Hp), lambda i, k: (i, 0)),   # h stash
                   pl.BlockSpec((1, 1, 2 * Hp), lambda i, k: (i, 0, 0))),
        scratch_shapes=[pltpu.VMEM((TB, Hp), jnp.float32)],
        compiler_params=cparams,
        cost_estimate=pl.CostEstimate(flops=flops1, transcendentals=0,
                                      bytes_accessed=bytes1),
    )(x_p, p["w1"])

    # ---- tiny host-side reduction; fold BN into a single FMA ---------------
    ssum = jnp.sum(stats[:, 0, :Hp], axis=0)             # (Hp,)
    ssq = jnp.sum(stats[:, 0, Hp:], axis=0)              # (Hp,)
    mean = ssum / B                                      # true B: padded rows add 0
    var = ssq / B - mean * mean                          # biased var (training BN)
    # TODO(synk): E[h^2]-E[h]^2 cancels badly if |mean| >> std; fine for
    # well-scaled SimSiam latents (stats are f32), else use a shifted pass.
    inv_std = jax.lax.rsqrt(var + EPS)
    scale = (p["gamma"][0] * inv_std)[None, :]           # (1, Hp)
    shift = (p["beta"][0] - mean * scale[0])[None, :]    # (1, Hp)

    # ---- pass 2: BN FMA + ReLU + fc2 ----------------------------------------
    flops2 = 2 * Bp * Hp * Dp
    bytes2 = (Bp * Hp * stash_item + Hp * Dp * w_item * (nt if nh > 1 else 1)
              + Bp * Dp * out_item + (2 * Hp + Dp) * 4)
    out_p = pl.pallas_call(
        _bn_relu_fc2_kernel,
        out_shape=jax.ShapeDtypeStruct((Bp, Dp), out_dtype),
        grid=(nt, nh),
        in_specs=[pl.BlockSpec((TB, TH), lambda i, k: (i, k)),    # h: streams
                  pl.BlockSpec((1, TH), lambda i, k: (0, k)),     # scale
                  pl.BlockSpec((1, TH), lambda i, k: (0, k)),     # shift
                  pl.BlockSpec((TH, Dp), lambda i, k: (k, 0)),    # W2 (resident if nh==1)
                  pl.BlockSpec((1, Dp), lambda i, k: (0, 0))],    # b2
        out_specs=pl.BlockSpec((TB, Dp), lambda i, k: (i, 0)),    # lane-dense
        scratch_shapes=[pltpu.VMEM((TB, Dp), jnp.float32)],
        compiler_params=cparams,
        cost_estimate=pl.CostEstimate(flops=flops2, transcendentals=0,
                                      bytes_accessed=bytes2),
    )(h_stash, scale, shift, p["w2"], p["b2"])

    return out_p[:B, :D]


# ---------------------------------------------------------------------------
# Reference / init (PyTorch layout)
# ---------------------------------------------------------------------------
def init_params(key, latent_dim):
    hidden = latent_dim // 4
    k1, k2, k3, k4 = jax.random.split(key, 4)
    return {
        "w1": jax.random.normal(k1, (hidden, latent_dim), jnp.float32) * 0.05,
        "b1": jax.random.normal(k2, (hidden,), jnp.float32) * 0.05,
        "w2": jax.random.normal(k3, (latent_dim, hidden), jnp.float32) * 0.05,
        "b2": jax.random.normal(k4, (latent_dim,), jnp.float32) * 0.05,
        "gamma": jnp.ones((hidden,), jnp.float32),
        "beta": jnp.zeros((hidden,), jnp.float32),
    }


def reference_forward(x, pt):
    """Pure-JAX f32 reference of the PyTorch forward (training-mode BN)."""
    h = x @ pt["w1"].T + pt["b1"]
    mean = jnp.mean(h, axis=0, keepdims=True)
    var = jnp.mean((h - mean) ** 2, axis=0, keepdims=True)
    h = (h - mean) * jax.lax.rsqrt(var + EPS)
    h = h * pt["gamma"] + pt["beta"]
    h = jnp.maximum(h, 0.0)
    return h @ pt["w2"].T + pt["b2"]


if __name__ == "__main__":
    latent_dim = 128      # hidden = 32 (padded to 128 lanes inside the kernel)
    batch = 40            # with batch_tile=16 -> Bp=48, 3 batch tiles

    key = jax.random.PRNGKey(0)
    kx, kp = jax.random.split(key)
    x = jax.random.normal(kx, (batch, latent_dim), jnp.float32)
    pt_params = init_params(kp, latent_dim)
    ref = reference_forward(x, pt_params)

    # f32 compute path (f32 stash) — must match the reference tightly.
    packed_f32 = pack_params(pt_params, compute_dtype=jnp.float32)
    out = jax.block_until_ready(
        predictor_forward(x, packed_f32, batch_tile=16))
    assert out.shape == (batch, latent_dim)
    assert jnp.allclose(out, ref, atol=1e-4, rtol=1e-4), "f32 mismatch vs reference"

    # Default bf16 MXU path (bf16 weights + bf16 h stash; BN stats stay f32).
    packed_bf16 = pack_params(pt_params)          # compute_dtype=bfloat16 default
    out_bf16 = jax.block_until_ready(
        predictor_forward(x, packed_bf16, batch_tile=16))
    assert out_bf16.shape == (batch, latent_dim)
    assert jnp.allclose(out_bf16, ref, atol=0.15, rtol=0.1), "bf16 mismatch"

    print("KERNEL_OK")
</pallas_src>

<mosaic_0001>
module attributes {stable_mosaic.version = 11 : i64} {
  func.func @_fc1_stats_kernel(%arg0: i32, %arg1: i32, %arg2: memref<16x128xf32, #tpu.memory_space<vmem>>, %arg3: memref<128x128xf32, #tpu.memory_space<vmem>>, %arg4: memref<16x128xf32, #tpu.memory_space<vmem>>, %arg5: memref<1x1x256xf32, #tpu.memory_space<vmem>>, %arg6: memref<16x128xf32, #tpu.memory_space<vmem>>) attributes {dimension_semantics = [#tpu.dimension_semantics<parallel>, #tpu.dimension_semantics<arbitrary>], iteration_bounds = array<i64: 3, 1>, scalar_prefetch = 0 : i64, scratch_operands = 1 : i64, tpu.core_type = #tpu.core_type<tc>, window_params = [{transform_indices = @transform_0, window_bounds = array<i64: 16, 128>}, {transform_indices = @transform_1, window_bounds = array<i64: 128, 128>}, {transform_indices = @transform_2, window_bounds = array<i64: 16, 128>}, {transform_indices = @transform_3, window_bounds = array<i64: 1, 1, 256>}]} {
    %c0_i32 = arith.constant 0 : i32
    %0 = arith.cmpi eq, %arg1, %c0_i32 : i32
    %1 = arith.extui %0 : i1 to i32
    %c0_i32_0 = arith.constant 0 : i32
    %2 = arith.cmpi ne, %1, %c0_i32_0 : i32
    scf.if %2 {
      %cst_10 = arith.constant 0.000000e+00 : f32
      %12 = vector.broadcast %cst_10 : f32 to vector<16x128xf32>
      %c0_11 = arith.constant 0 : index
      %c0_12 = arith.constant 0 : index
      %13 = vector.load %arg6[%c0_11, %c0_12] : memref<16x128xf32, #tpu.memory_space<vmem>>, vector<16x128xf32>
      tpu.vector_store %arg6[%c0_11, %c0_12], %12 {strides = array<i32>} : memref<16x128xf32, #tpu.memory_space<vmem>>, vector<16x128xf32>,
    } else {
    }
    %c0 = arith.constant 0 : index
    %c0_1 = arith.constant 0 : index
    %3 = vector.load %arg6[%c0, %c0_1] : memref<16x128xf32, #tpu.memory_space<vmem>>, vector<16x128xf32>
    %c0_2 = arith.constant 0 : index
    %c0_3 = arith.constant 0 : index
    %4 = vector.load %arg2[%c0_2, %c0_3] : memref<16x128xf32, #tpu.memory_space<vmem>>, vector<16x128xf32>
    %c0_4 = arith.constant 0 : index
    %c0_5 = arith.constant 0 : index
    %5 = vector.load %arg3[%c0_4, %c0_5] : memref<128x128xf32, #tpu.memory_space<vmem>>, vector<128x128xf32>
    %cst = arith.constant dense<0.000000e+00> : vector<16x128xf32>
    %6 = tpu.matmul %4, %5, %cst {dimension_numbers = #tpu.dot_dimension_numbers<[1], [0], [0], [1], [0, 0, 1, 1], [], []>} : vector<16x128xf32>, vector<128x128xf32>, vector<16x128xf32> -> vector<16x128xf32>
    %7 = arith.addf %3, %6 : vector<16x128xf32>
    %c0_6 = arith.constant 0 : index
    %c0_7 = arith.constant 0 : index
    %8 = vector.load %arg6[%c0_6, %c0_7] : memref<16x128xf32, #tpu.memory_space<vmem>>, vector<16x128xf32>
    tpu.vector_store %arg6[%c0_6, %c0_7], %7 {strides = array<i32>} : memref<16x128xf32, #tpu.memory_space<vmem>>, vector<16x128xf32>,
    %c0_i32_8 = arith.constant 0 : i32
    %9 = arith.cmpi eq, %arg1, %c0_i32_8 : i32
    %10 = arith.extui %9 : i1 to i32
    %c0_i32_9 = arith.constant 0 : i32
    %11 = arith.cmpi ne, %10, %c0_i32_9 : i32
    scf.if %11 {
      %c0_10 = arith.constant 0 : index
      %c0_11 = arith.constant 0 : index
      %12 = vector.load %arg6[%c0_10, %c0_11] : memref<16x128xf32, #tpu.memory_space<vmem>>, vector<16x128xf32>
      %c0_12 = arith.constant 0 : index
      %c0_13 = arith.constant 0 : index
      %13 = vector.load %arg4[%c0_12, %c0_13] : memref<16x128xf32, #tpu.memory_space<vmem>>, vector<16x128xf32>
      tpu.vector_store %arg4[%c0_12, %c0_13], %12 {strides = array<i32>} : memref<16x128xf32, #tpu.memory_space<vmem>>, vector<16x128xf32>,
      %cst_14 = arith.constant dense<0.000000e+00> : vector<128xf32>
      %14 = vector.multi_reduction <add>, %12, %cst_14 [0] : vector<16x128xf32> to vector<128xf32>
      %15 = vector.shape_cast %14 : vector<128xf32> to vector<1x128xf32>
      %16 = arith.mulf %12, %12 : vector<16x128xf32>
      %cst_15 = arith.constant dense<0.000000e+00> : vector<128xf32>
      %17 = vector.multi_reduction <add>, %16, %cst_15 [0] : vector<16x128xf32> to vector<128xf32>
      %18 = vector.shape_cast %17 : vector<128xf32> to vector<1x128xf32>
      %c0_16 = arith.constant 0 : index
      %c0_17 = arith.constant 0 : index
      %c0_18 = arith.constant 0 : index
      %19 = vector.load %arg5[%c0_16, %c0_17, %c0_18] : memref<1x1x256xf32, #tpu.memory_space<vmem>>, vector<1x1x128xf32>
      %20 = vector.shape_cast %19 : vector<1x1x128xf32> to vector<1x128xf32>
      %21 = vector.shape_cast %15 : vector<1x128xf32> to vector<1x1x128xf32>
      tpu.vector_store %arg5[%c0_16, %c0_17, %c0_18], %21 {strides = array<i32>} : memref<1x1x256xf32, #tpu.memory_space<vmem>>, vector<1x1x128xf32>,
      %c0_19 = arith.constant 0 : index
      %c0_20 = arith.constant 0 : index
      %c128 = arith.constant 128 : index
      %22 = vector.load %arg5[%c0_19, %c0_20, %c128] : memref<1x1x256xf32, #tpu.memory_space<vmem>>, vector<1x1x128xf32>
      %23 = vector.shape_cast %22 : vector<1x1x128xf32> to vector<1x128xf32>
      %24 = vector.shape_cast %18 : vector<1x128xf32> to vector<1x1x128xf32>
      tpu.vector_store %arg5[%c0_19, %c0_20, %c128], %24 {strides = array<i32>} : memref<1x1x256xf32, #tpu.memory_space<vmem>>, vector<1x1x128xf32>,
    } else {
    }
    return
  }
  func.func @transform_0(%arg0: i32, %arg1: i32) -> (i32, i32) {
    %c0_i32 = arith.constant 0 : i32
    return %arg0, %arg1 : i32, i32
  }
  func.func @transform_1(%arg0: i32, %arg1: i32) -> (i32, i32) {
    %c0_i32 = arith.constant 0 : i32
    %c0_i32_0 = arith.constant 0 : i32
    return %arg1, %c0_i32 : i32, i32
  }
  func.func @transform_2(%arg0: i32, %arg1: i32) -> (i32, i32) {
    %c0_i32 = arith.constant 0 : i32
    %c0_i32_0 = arith.constant 0 : i32
    return %arg0, %c0_i32 : i32, i32
  }
  func.func @transform_3(%arg0: i32, %arg1: i32) -> (i32, i32, i32) {
    %c0_i32 = arith.constant 0 : i32
    %c0_i32_0 = arith.constant 0 : i32
    %c0_i32_1 = arith.constant 0 : i32
    return %arg0, %c0_i32, %c0_i32_0 : i32, i32, i32
  }
}

</mosaic_0001>

<llo_original>
// kernel: tpu_custom_call.1
$region0: #{tpu_custom_call.1}
  #allocation0 [shape = 'u32[]', space=smem, size = 0x4, offset = 0x4, fixed_abs, tag = 'smem constant byte address 0x4 - core index']
  #allocation1 [shape = 'u32[144,128]{1,0:T(1,128)}', space=vmem, size = 0x12000, scoped, tag = 'internal scratch']
  #allocation2 [shape = 'f32[16,128]{1,0:T(8,128)}', space=vmem, size = 0x2000, scoped, tag = 'scratch operand']
  %s0 = inlined_call_operand.hbm [shape: f32[48,128], index: 0, kind: input, shape index: {}]
  %s1 = inlined_call_operand.hbm [shape: f32[128,128], index: 1, kind: input, shape index: {}]
  %s2 = inlined_call_operand.hbm [shape: f32[48,128], index: 2, kind: output, shape index: {0}]
  %s3 = inlined_call_operand.hbm [shape: f32[3,1,256], index: 3, kind: output, shape index: {1}]
  %4 = xla_tuple %s2, %s3
  %s5 = sld [smem:[#allocation0]]
  $region65: #{tpu_custom_call.1} parent=0
    _
  %s7 = ssub.s32 1, %s5
  %s8 = scalar_select 0, %s7, %s5
  $region1: #{tpu_custom_call.1} parent=0
    #allocation3 [shape = 'u8[16384]{0}', space=vmem, size = 0x4000, scoped, tag = 'input window, operand 0']
    #allocation4 [shape = 's32[2]{0}', space=sflag, size = 0x8, scoped, tag = 'scoped memory for tpu_custom_call.1']
    #allocation5 [shape = 's32[2]{0}', space=sflag, size = 0x8, scoped, tag = 'scoped memory for tpu_custom_call.1']
    #allocation6 [shape = 'u8[65536]{0}', space=vmem, size = 0x10000, scoped, tag = 'input window, operand 1, single buffered']
    #allocation7 [shape = 's32[1]{0}', space=sflag, size = 0x4, scoped, tag = 'scoped memory for tpu_custom_call.1']
    #allocation8 [shape = 'u8[16384]{0}', space=vmem, size = 0x4000, scoped, tag = 'output window, operand 0']
    #allocation9 [shape = 'u8[2048]{0}', space=vmem, size = 0x800, scoped, tag = 'output window, operand 1']
    #allocation10 [shape = 's32[2]{0}', space=sflag, size = 0x8, scoped, tag = 'scoped memory for tpu_custom_call.1']
    %9 = vsyncpa [#allocation4], 0
    %s10 = scalar_lea.sflag [#allocation4], 1
    %11 = vsyncpa %s10, 0
    %12 = vsyncpa [#allocation7], 0
    %13 = vsyncpa [#allocation5], 0
    %s14 = scalar_lea.sflag [#allocation5], 1
    %15 = vsyncpa %s14, 0
    %16 = vsyncpa [#allocation10], 0
    %s17 = scalar_lea.sflag [#allocation10], 1
    %18 = vsyncpa %s17, 0
    loop: start=0, step=1, limit=5
    $region2: #{tpu_custom_call.1} parent=1 // loop_pre_header
      _
    $region3: #{tpu_custom_call.1} parent=1 // loop_header
      %s20 = sphi 0, %s24
      %p21 = scmp.ge.s32.totalorder %s20, 5
      %s27 = sphi 0, %s39
      %s28 = sphi 0, %s35
      %s29 = sphi 0, %s27
      %s30 = sphi 0, %s28
      %s31 = sphi 0, %s29
      %s32 = sphi 0, %s30
      %s44 = sphi 0, %s46
      %s47 = sphi 0, %s44
      %s48 = sphi 0, %s47
      %s64 = sphi 0, %s48
      %s70 = sphi 0, %s72
      %s73 = sphi 0, %s70
      %s74 = sphi 0, %s73
      %s90 = sphi 0, %s74
      %s96 = sphi 0, %s98
      %s99 = sphi 0, %s96
      %s100 = sphi 0, %s99
      %s116 = sphi 0, %s100
      %s122 = sphi 0, %s124
      %s125 = sphi 0, %s122
      %s126 = sphi 0, %s125
      %s142 = sphi 0, %s126
    $region4: #{tpu_custom_call.1} parent=1 // loop_header_branch
      %23 = sbr.rel (%p21) target = $region8
    $region5: #{tpu_custom_call.1} parent=1 // loop_body
      %s25 = ssub.s32 %s20, 1
      %s26 = ssub.s32 %s20, 2
      %s33 = sadd.s32 1, %s28
      %p34 = scmp.ge.s32.totalorder %s33, 1
      %s35 = scalar_select %p34, 0, %s33
      %s36 = sadd.s32 1, %s27
      %s37 = scalar_select %p34, %s36, %s27
      %p38 = scmp.ge.s32.totalorder %s37, 3
      %s39 = scalar_select %p38, 0, %s37
      %s40 = ssub.s32 %s27, %s39
      %s41 = ssub.s32 %s28, %s35
      %s42 = sor.u32 %s40, %s41
      %p43 = scmp.eq.s32.totalorder %s42, 0
      %s45 = sadd.s32 %s44, 1
      %s46 = scalar_select %p43, %s44, %s45
      %p49 = pneg %p43
      %p50 = scmp.eq.s32.totalorder %s20, 2
      %p51 = por %p49, %p50
      %p52 = scmp.ne.s32.totalorder %s44, %s47
      %p53 = scmp.eq.s32.totalorder %s20, 0
      %p54 = por %p52, %p53
      %p55 = scmp.ne.s32.totalorder %s44, %s47
      %p56 = scmp.eq.s32.totalorder %s25, 2
      %p57 = por %p55, %p56
      %p58 = scmp.ne.s32.totalorder %s47, %s48
      %p59 = scmp.eq.s32.totalorder %s25, 0
      %p60 = por %p58, %p59
      %p61 = scmp.ne.s32.totalorder %s47, %s48
      %p62 = scmp.eq.s32.totalorder %s26, 2
      %p63 = por %p61, %p62
      %p65 = scmp.ne.s32.totalorder %s48, %s64
      %p66 = scmp.eq.s32.totalorder %s26, 0
      %p67 = por %p65, %p66
      %s68 = ssub.s32 %s28, %s35
      %p69 = scmp.eq.s32.totalorder %s68, 0
      %s71 = sadd.s32 %s70, 1
      %s72 = scalar_select %p69, %s70, %s71
      %p75 = pneg %p69
      %p76 = scmp.eq.s32.totalorder %s20, 2
      %p77 = por %p75, %p76
      %p78 = scmp.ne.s32.totalorder %s70, %s73
      %p79 = scmp.eq.s32.totalorder %s20, 0
      %p80 = por %p78, %p79
      %p81 = scmp.ne.s32.totalorder %s70, %s73
      %p82 = scmp.eq.s32.totalorder %s25, 2
      %p83 = por %p81, %p82
      %p84 = scmp.ne.s32.totalorder %s73, %s74
      %p85 = scmp.eq.s32.totalorder %s25, 0
      %p86 = por %p84, %p85
      %p87 = scmp.ne.s32.totalorder %s73, %s74
      %p88 = scmp.eq.s32.totalorder %s26, 2
      %p89 = por %p87, %p88
      %p91 = scmp.ne.s32.totalorder %s74, %s90
      %p92 = scmp.eq.s32.totalorder %s26, 0
      %p93 = por %p91, %p92
      %s94 = ssub.s32 %s27, %s39
      %p95 = scmp.eq.s32.totalorder %s94, 0
      %s97 = sadd.s32 %s96, 1
      %s98 = scalar_select %p95, %s96, %s97
      %p101 = pneg %p95
      %p102 = scmp.eq.s32.totalorder %s20, 2
      %p103 = por %p101, %p102
      %p104 = scmp.ne.s32.totalorder %s96, %s99
      %p105 = scmp.eq.s32.totalorder %s20, 0
      %p106 = por %p104, %p105
      %p107 = scmp.ne.s32.totalorder %s96, %s99
      %p108 = scmp.eq.s32.totalorder %s25, 2
      %p109 = por %p107, %p108
      %p110 = scmp.ne.s32.totalorder %s99, %s100
      %p111 = scmp.eq.s32.totalorder %s25, 0
      %p112 = por %p110, %p111
      %p113 = scmp.ne.s32.totalorder %s99, %s100
      %p114 = scmp.eq.s32.totalorder %s26, 2
      %p115 = por %p113, %p114
      %p117 = scmp.ne.s32.totalorder %s100, %s116
      %p118 = scmp.eq.s32.totalorder %s26, 0
      %p119 = por %p117, %p118
      %s120 = ssub.s32 %s27, %s39
      %p121 = scmp.eq.s32.totalorder %s120, 0
      %s123 = sadd.s32 %s122, 1
      %s124 = scalar_select %p121, %s122, %s123
      %p127 = pneg %p121
      %p128 = scmp.eq.s32.totalorder %s20, 2
      %p129 = por %p127, %p128
      %p130 = scmp.ne.s32.totalorder %s122, %s125
      %p131 = scmp.eq.s32.totalorder %s20, 0
      %p132 = por %p130, %p131
      %p133 = scmp.ne.s32.totalorder %s122, %s125
      %p134 = scmp.eq.s32.totalorder %s25, 2
      %p135 = por %p133, %p134
      %p136 = scmp.ne.s32.totalorder %s125, %s126
      %p137 = scmp.eq.s32.totalorder %s25, 0
      %p138 = por %p136, %p137
      %p139 = scmp.ne.s32.totalorder %s125, %s126
      %p140 = scmp.eq.s32.totalorder %s26, 2
      %p141 = por %p139, %p140
      %p143 = scmp.ne.s32.totalorder %s126, %s142
      %p144 = scmp.eq.s32.totalorder %s26, 0
      %p145 = por %p143, %p144
      %p146 = scmp.le.s32.totalorder 1, %s20
      %p147 = scmp.lt.s32.totalorder %s20, 4
      %p148 = pnand %p146, %p147
      %p149 = pneg %p148
      // Predicated region
      $region9: #{tpu_custom_call.1} parent=5 // pred_check
        _
      $region10: #{tpu_custom_call.1} parent=5 // pred_check_branch
        %151 = sbr.rel (%p148) target = $region12
      $region11: #{tpu_custom_call.1} parent=5 // pred_region
        %s152 = ssub.s32 %s20, 1
        // Predicated region
        $region13: #{tpu_custom_call.1} parent=11 // pred_check
          %p153 = pneg %p86
        $region14: #{tpu_custom_call.1} parent=11 // pred_check_branch
          %155 = sbr.rel (%p153) target = $region16
        $region15: #{tpu_custom_call.1} parent=11 // pred_region
          %s156 = smul.u32 16, %s30
          %s158 = ssub.s32 2048, 2048
          %159 = vsyncadd [#allocation7], %s158
          %s160 = smul.addr %s156, 128
          %s161 = scalar_lea.hbm %s1, %s160
          %s162 = sshll.u32 [#allocation6], 4
          %s163 = int_to_ptr.vmem [resolvable:$true] %s162
          %168 = dma.hbm_to_vmem [thread:$0]  %s161, 2048, %s163, [#allocation7], 128, 128, 8
        $region16: #{tpu_custom_call.1} parent=11 // pred_fallthru
          _
      $region12: #{tpu_custom_call.1} parent=5 // pred_fallthru
        _
      %p169 = scmp.lt.s32.totalorder %s20, 3
      // Predicated region
      $region17: #{tpu_custom_call.1} parent=5 // pred_check
        %p170 = pneg %p169
      $region18: #{tpu_custom_call.1} parent=5 // pred_check_branch
        %172 = sbr.rel (%p170) target = $region20
      $region19: #{tpu_custom_call.1} parent=5 // pred_region
        // Predicated region
        $region21: #{tpu_custom_call.1} parent=19 // pred_check
          %p173 = pneg %p54
        $region22: #{tpu_custom_call.1} parent=19 // pred_check_branch
          %175 = sbr.rel (%p173) target = $region24
        $region23: #{tpu_custom_call.1} parent=19 // pred_region
          %s176 = sand.u32 %s44, 1
          %s177 = scalar_lea.sflag [#allocation4], %s176
          %s178 = sand.u32 %s44, 1
          %s179 = smul.addr %s178, 16
          %s180 = scalar_lea.vmem [#allocation3], %s179
          %s181 = smul.u32 2, %s27
          %s183 = ssub.s32 256, 256
          %184 = vsyncadd %s177, %s183
          %s185 = sadd.s32 %s28, %s181
          %s186 = smul.addr %s185, 128
          %s187 = scalar_lea.hbm %s0, %s186
          %s188 = sshll.u32 %s180, 4
          %s189 = int_to_ptr.vmem [resolvable:$true] %s188
          %194 = dma.hbm_to_vmem [thread:$0]  %s187, 256, %s189, %s177, 128, 128, 8
        $region24: #{tpu_custom_call.1} parent=19 // pred_fallthru
          _
      $region20: #{tpu_custom_call.1} parent=5 // pred_fallthru
        _
      %p195 = scmp.le.s32.totalorder 1, %s20
      %p196 = scmp.lt.s32.totalorder %s20, 4
      %p197 = pnand %p195, %p196
      %p198 = pneg %p197
      // Predicated region
      $region25: #{tpu_custom_call.1} parent=5 // pred_check
        _
      $region26: #{tpu_custom_call.1} parent=5 // pred_check_branch
        %200 = sbr.rel (%p197) target = $region28
      $region27: #{tpu_custom_call.1} parent=5 // pred_region
        %s201 = ssub.s32 %s20, 1
        %s202 = sand.u32 %s47, 1
        %s203 = scalar_lea.sflag [#allocation4], %s202
        %s204 = sand.u32 %s47, 1
        %s205 = smul.addr %s204, 16
        %s206 = scalar_lea.vmem [#allocation3], %s205
        // Predicated region
        $region29: #{tpu_custom_call.1} parent=27 // pred_check
          %p207 = pneg %p60
        $region30: #{tpu_custom_call.1} parent=27 // pred_check_branch
          %209 = sbr.rel (%p207) target = $region32
        $region31: #{tpu_custom_call.1} parent=27 // pred_region
          %210 = dma.done %s203, 256
        $region32: #{tpu_custom_call.1} parent=27 // pred_fallthru
          _
        // Predicated region
        $region33: #{tpu_custom_call.1} parent=27 // pred_check
          %p211 = pneg %p86
        $region34: #{tpu_custom_call.1} parent=27 // pred_check_branch
          %213 = sbr.rel (%p211) target = $region36
        $region35: #{tpu_custom_call.1} parent=27 // pred_region
          %214 = dma.done [#allocation7], 2048
        $region36: #{tpu_custom_call.1} parent=27 // pred_fallthru
          _
        %s215 = sand.u32 %s47, 1
        %s216 = scalar_lea.sflag [#allocation4], %s215
        %s217 = sand.u32 %s47, 1
        %s218 = smul.addr %s217, 16
        %s219 = scalar_lea.vmem [#allocation3], %s218
        %p220 = pneg %p60
        %p221 = pneg %p57
        %p222 = pneg %p86
        %p223 = pneg %p83
        %p224 = pneg %p112
        %p225 = pneg %p109
        %s226 = sand.u32 %s99, 1
        %s227 = scalar_lea.sflag [#allocation5], %s226
        %s228 = sand.u32 %s99, 1
        %s229 = smul.addr %s228, 16
        %s230 = scalar_lea.vmem [#allocation8], %s229
        %p231 = pneg %p138
        %p232 = pneg %p135
        %s233 = sand.u32 %s125, 1
        %s234 = scalar_lea.sflag [#allocation10], %s233
        %s235 = sand.u32 %s125, 1
        %s236 = smul.addr %s235, 2
        %s237 = scalar_lea.vmem [#allocation9], %s236
        %s238 = smul.u32 2, %s29
        %s239 = smul.u32 16, %s30
        %s240 = smul.u32 2, %s29
        %p241 = scmp.eq.s32.totalorder %s30, 0
        // Predicated region
        $region37: #{tpu_custom_call.1} parent=27 // pred_check
          %p242 = pneg %p241
        $region38: #{tpu_custom_call.1} parent=27 // pred_check_branch
          %244 = sbr.rel (%p242) target = $region40
        $region39: #{tpu_custom_call.1} parent=27 // pred_region
          %245 = vst [vmem:[#allocation2] sm:$0xff] 0.0
          %246 = vst [vmem:[#allocation2 + $0x8] sm:$0xff] 0.0
        $region40: #{tpu_custom_call.1} parent=27 // pred_fallthru
          _
        %v247 = vld [vmem:[#allocation2] sm:$0xff]
        %v248 = vld [vmem:[#allocation2 + $0x8] sm:$0xff]
        %v249 = vld [vmem:[%s206] sm:$0xff]
        %v250 = vld [vmem:[%s206 + $0x8] sm:$0xff]
        %v251 = vld [vmem:[#allocation6] sm:$0xff]
        %v252 = vld [vmem:[#allocation6 + $0x8] sm:$0xff]
        %v253 = vld [vmem:[#allocation6 + $0x10] sm:$0xff]
        %v254 = vld [vmem:[#allocation6 + $0x18] sm:$0xff]
        %v255 = vld [vmem:[#allocation6 + $0x20] sm:$0xff]
        %v256 = vld [vmem:[#allocation6 + $0x28] sm:$0xff]
        %v257 = vld [vmem:[#allocation6 + $0x30] sm:$0xff]
        %v258 = vld [vmem:[#allocation6 + $0x38] sm:$0xff]
        %v259 = vld [vmem:[#allocation6 + $0x40] sm:$0xff]
        %v260 = vld [vmem:[#allocation6 + $0x48] sm:$0xff]
        %v261 = vld [vmem:[#allocation6 + $0x50] sm:$0xff]
        %v262 = vld [vmem:[#allocation6 + $0x58] sm:$0xff]
        %v263 = vld [vmem:[#allocation6 + $0x60] sm:$0xff]
        %v264 = vld [vmem:[#allocation6 + $0x68] sm:$0xff]
        %v265 = vld [vmem:[#allocation6 + $0x70] sm:$0xff]
        %v266 = vld [vmem:[#allocation6 + $0x78] sm:$0xff]
        %267 = vmatprep.subr.mxu0 0.0
        %268 = vmatpush1.msra.mxu0 %v251
        %269 = vmatprep.subr.mxu0 0.0
        %270 = vmatpush1.msra.mxu0 %v252
        %271 = vmatprep.subr.mxu0 0.0
        %272 = vmatpush1.msra.mxu0 %v253
        %273 = vmatprep.subr.mxu0 0.0
        %274 = vmatpush1.msra.mxu0 %v254
        %275 = vmatprep.subr.mxu0 0.0
        %276 = vmatpush1.msra.mxu0 %v255
        %277 = vmatprep.subr.mxu0 0.0
        %278 = vmatpush1.msra.mxu0 %v256
        %279 = vmatprep.subr.mxu0 0.0
        %280 = vmatpush1.msra.mxu0 %v257
        %281 = vmatprep.subr.mxu0 0.0
        %282 = vmatpush1.msra.mxu0 %v258
        %283 = vmatprep.subr.mxu0 0.0
        %284 = vmatpush1.msra.mxu0 %v259
        %285 = vmatprep.subr.mxu0 0.0
        %286 = vmatpush1.msra.mxu0 %v260
        %287 = vmatprep.subr.mxu0 0.0
        %288 = vmatpush1.msra.mxu0 %v261
        %289 = vmatprep.subr.mxu0 0.0
        %290 = vmatpush1.msra.mxu0 %v262
        %291 = vmatprep.subr.mxu0 0.0
        %292 = vmatpush1.msra.mxu0 %v263
        %293 = vmatprep.subr.mxu0 0.0
        %294 = vmatpush1.msra.mxu0 %v264
        %295 = vmatprep.subr.mxu0 0.0
        %296 = vmatpush1.msra.mxu0 %v265
        %297 = vmatprep.subr.mxu0 0.0
        %298 = vmatpush1.msra.mxu0 %v266
        %299 = vmatprep.subr.mxu0 0.0
        %300 = vmatpush1.msra.mxu0 0.0
        %301 = vmatprep.subr.mxu0 0.0
        %302 = vmatpush1.msra.mxu0 0.0
        %303 = vmatprep.subr.mxu0 0.0
        %304 = vmatpush1.msra.mxu0 0.0
        %305 = vmatprep.subr.mxu0 0.0
        %306 = vmatpush1.msra.mxu0 0.0
        %307 = vmatprep.subr.mxu0 0.0
        %308 = vmatpush1.msra.mxu0 0.0
        %309 = vmatprep.subr.mxu0 0.0
        %310 = vmatpush1.msra.mxu0 0.0
        %311 = vmatprep.subr.mxu0 0.0
        %312 = vmatpush1.msra.mxu0 0.0
        %313 = vmatprep.subr.mxu0 0.0
        %314 = vmatpush1.msra.mxu0 0.0
        %315 = vmatprep.subr.mxu0 0.0
        %316 = vmatpush1.msra.mxu0 0.0
        %317 = vmatprep.subr.mxu0 0.0
        %318 = vmatpush1.msra.mxu0 0.0
        %319 = vmatprep.subr.mxu0 0.0
        %320 = vmatpush1.msra.mxu0 0.0
        %321 = vmatprep.subr.mxu0 0.0
        %322 = vmatpush1.msra.mxu0 0.0
        %323 = vmatprep.subr.mxu0 0.0
        %324 = vmatpush1.msra.mxu0 0.0
        %325 = vmatprep.subr.mxu0 0.0
        %326 = vmatpush1.msra.mxu0 0.0
        %327 = vmatprep.subr.mxu0 0.0
        %328 = vmatpush1.msra.mxu0 0.0
        %329 = vmatprep.subr.mxu0 0.0
        %330 = vmatpush1.msra.mxu0 0.0
        %331 = vmatprep.mubr.f32.mxu0 0.0
        %332 = vmatmul.mubr.f32.gmra.mrb[0].mxu0 %v249
        %v333 = vpop.f32.mrb[0].mxu0
        %v334 = vadd.f32 0.0, %v333
        %v335 = vpop.f32.mrb[0].mxu0
        %336 = vmatprep.mubr.f32.mxu0 0.0
        %337 = vmatmul.mubr.f32.gmra.mrb[0].mxu0 %v250
        %v338 = vpop.f32.mrb[0].mxu0
        %v339 = vadd.f32 0.0, %v338
        %v340 = vpop.f32.mrb[0].mxu0
        %341 = vdwg.mxu0
        %v342 = vadd.f32 %v247, %v334
        %v343 = vadd.f32 %v248, %v339
        %344 = vst [vmem:[#allocation2] sm:$0xff] %v342
        %345 = vst [vmem:[#allocation2 + $0x8] sm:$0xff] %v343
        // Predicated region
        $region41: #{tpu_custom_call.1} parent=27 // pred_check
          %p346 = pneg %p241
        $region42: #{tpu_custom_call.1} parent=27 // pred_check_branch
          %348 = sbr.rel (%p346) target = $region44
        $region43: #{tpu_custom_call.1} parent=27 // pred_region
          %v349 = vld [vmem:[#allocation2] sm:$0xff]
          %v350 = vld [vmem:[#allocation2 + $0x8] sm:$0xff]
          %351 = vst [vmem:[%s230] sm:$0xff] %v349
          %352 = vst [vmem:[%s230 + $0x8] sm:$0xff] %v350
          %v353 = vadd.f32 %v349, %v350
          %v354 = vrot.slane %v353, 4
          %v355 = vadd.f32 %v353, %v354
          %v356 = vrot.slane %v355, 2
          %v357 = vadd.f32 %v355, %v356
          %v358 = vrot.slane %v357, 1
          %v359 = vadd.f32 %v357, %v358
          %v360 = vmul.f32 %v349, %v349
          %v361 = vmul.f32 %v350, %v350
          %v362 = vadd.f32 %v360, %v361
          %v363 = vrot.slane %v362, 4
          %v364 = vadd.f32 %v362, %v363
          %v365 = vrot.slane %v364, 2
          %v366 = vadd.f32 %v364, %v365
          %v367 = vrot.slane %v366, 1
          %v368 = vadd.f32 %v366, %v367
          %v369 = vlaneseq
          %vm370 = vcmp.ge.s32.totalorder %v369, 0
          %vm371 = vcmp.lt.s32.totalorder %v369, 128
          %vm372 = vmand %vm370, %vm371
          %373 = vst.msk [vmem:[%s237] sm:$0x1] %vm372, %v359
          %374 = vst.msk [vmem:[%s237 + $0x1] sm:$0x1] %vm372, %v368
        $region44: #{tpu_custom_call.1} parent=27 // pred_fallthru
          _
        %s375 = sand.u32 %s99, 1
        %s376 = scalar_lea.sflag [#allocation5], %s375
        %s377 = sand.u32 %s99, 1
        %s378 = smul.addr %s377, 16
        %s379 = scalar_lea.vmem [#allocation8], %s378
        %s380 = sand.u32 %s125, 1
        %s381 = scalar_lea.sflag [#allocation10], %s380
        %s382 = sand.u32 %s125, 1
        %s383 = smul.addr %s382, 2
        %s384 = scalar_lea.vmem [#allocation9], %s383
        // Predicated region
        $region45: #{tpu_custom_call.1} parent=27 // pred_check
          %p385 = pneg %p109
        $region46: #{tpu_custom_call.1} parent=27 // pred_check_branch
          %387 = sbr.rel (%p385) target = $region48
        $region47: #{tpu_custom_call.1} parent=27 // pred_region
          %s388 = smul.u32 2, %s29
          %s390 = ssub.s32 256, 256
          %391 = vsyncadd %s376, %s390
          %s392 = smul.addr %s388, 128
          %s393 = scalar_lea.hbm %s2, %s392
          %s394 = sshll.u32 %s379, 4
          %s395 = int_to_ptr.vmem [resolvable:$true] %s394
          %400 = dma.vmem_to_hbm [thread:$0]  %s395, 256, %s393, %s376, 128, 128, 8
        $region48: #{tpu_custom_call.1} parent=27 // pred_fallthru
          _
        // Predicated region
        $region49: #{tpu_custom_call.1} parent=27 // pred_check
          %p401 = pneg %p135
        $region50: #{tpu_custom_call.1} parent=27 // pred_check_branch
          %403 = sbr.rel (%p401) target = $region52
        $region51: #{tpu_custom_call.1} parent=27 // pred_region
          %s405 = ssub.s32 32, 32
          %406 = vsyncadd %s381, %s405
          %s407 = smul.addr %s29, 2
          %s408 = smul.addr %s407, 16
          %s409 = scalar_lea.hbm %s3, %s408
          %s411 = sshll.u32 %s384, 4
          %s412 = int_to_ptr.vmem [resolvable:$true] %s411
          %414 = dma.vmem_to_hbm [thread:$0]  %s412, 32, %s409, %s381
        $region52: #{tpu_custom_call.1} parent=27 // pred_fallthru
          _
      $region28: #{tpu_custom_call.1} parent=5 // pred_fallthru
        _
      %p415 = scmp.le.s32.totalorder 2, %s20
      // Predicated region
      $region53: #{tpu_custom_call.1} parent=5 // pred_check
        %p416 = pneg %p415
      $region54: #{tpu_custom_call.1} parent=5 // pred_check_branch
        %418 = sbr.rel (%p416) target = $region56
      $region55: #{tpu_custom_call.1} parent=5 // pred_region
        %s419 = ssub.s32 %s20, 2
        // Predicated region
        $region57: #{tpu_custom_call.1} parent=55 // pred_check
          %p420 = pneg %p115
        $region58: #{tpu_custom_call.1} parent=55 // pred_check_branch
          %422 = sbr.rel (%p420) target = $region60
        $region59: #{tpu_custom_call.1} parent=55 // pred_region
          %s423 = sand.u32 %s100, 1
          %s424 = scalar_lea.sflag [#allocation5], %s423
          %s425 = sand.u32 %s100, 1
          %s426 = smul.addr %s425, 16
          %s427 = scalar_lea.vmem [#allocation8], %s426
          %428 = dma.done %s424, 256
        $region60: #{tpu_custom_call.1} parent=55 // pred_fallthru
          _
        // Predicated region
        $region61: #{tpu_custom_call.1} parent=55 // pred_check
          %p429 = pneg %p141
        $region62: #{tpu_custom_call.1} parent=55 // pred_check_branch
          %431 = sbr.rel (%p429) target = $region64
        $region63: #{tpu_custom_call.1} parent=55 // pred_region
          %s432 = sand.u32 %s126, 1
          %s433 = scalar_lea.sflag [#allocation10], %s432
          %s434 = sand.u32 %s126, 1
          %s435 = smul.addr %s434, 2
          %s436 = scalar_lea.vmem [#allocation9], %s435
          %437 = dma.done %s433, 32
        $region64: #{tpu_custom_call.1} parent=55 // pred_fallthru
          _
      $region56: #{tpu_custom_call.1} parent=5 // pred_fallthru
        _
    $region6: #{tpu_custom_call.1} parent=1 // loop_footer
      %s24 = sadd.s32 1, %s20
    $region7: #{tpu_custom_call.1} parent=1 // loop_footer_branch
      %19 = sbr.rel target = $region3
    $region8: #{tpu_custom_call.1} parent=1 // loop_exit
      _
    %438 = vsyncpa [#allocation4], 1
    %s439 = scalar_lea.sflag [#allocation4], 1
    %440 = vsyncpa %s439, 1
    %441 = vsyncpa [#allocation7], 1
    %442 = vsyncpa [#allocation5], 1
    %s443 = scalar_lea.sflag [#allocation5], 1
    %444 = vsyncpa %s443, 1
    %445 = vsyncpa [#allocation10], 1
    %s446 = scalar_lea.sflag [#allocation10], 1
    %447 = vsyncpa %s446, 1

</llo_original>
